<compile_context>
chip_gen: v5e
topology: v5e:2x2
jax: 0.10.0
libtpu: 0.0.40
codegen_flags: <defaults>
</compile_context>

<pallas_src>
import functools

import jax
import jax.numpy as jnp
from jax.experimental import pallas as pl
from jax.experimental.pallas import tpu as pltpu


def _resblock_kernel(x_ref, w_ref, b_ref, o_ref, xpad_ref, *,
                     kw, pad, halo, matmul_dtype):
    # x_ref   : (1, L, C)        activations, channel-last, f32 (read once)
    # w_ref   : (K*C_in, C_out)  conv weight, 0.3-scaled, matmul_dtype
    # b_ref   : (1, C_out)       conv bias, 0.3-scaled, f32
    # o_ref   : (1, L, C)        output, f32
    # xpad_ref: (2*halo + L, C)  VMEM scratch for the zero-padded ReLU window
    L = o_ref.shape[1]

    x = x_ref[0]                                           # (L, C), single load

    # Build zero-padded ReLU(x) in the scratch. The live window starts at the
    # sublane-aligned offset `halo`, so the big store is tile-aligned; the
    # halo rows stay zero (zero padding is ReLU-invariant).
    xpad_ref[...] = jnp.zeros(xpad_ref.shape, xpad_ref.dtype)
    xpad_ref[halo:halo + L, :] = jnp.maximum(x, 0.0)

    # im2col: K ref-side shifted windows concatenated on the lane axis.
    base = halo - pad
    lhs = jnp.concatenate(
        [xpad_ref[base + k:base + k + L, :] for k in range(kw)], axis=-1)

    # One MXU matmul (bf16 operands, f32 accumulate); 0.3 is folded into w/b.
    acc = jnp.dot(lhs.astype(matmul_dtype), w_ref[...],
                  preferred_element_type=jnp.float32)      # (L, C_out) f32

    o_ref[0] = x + acc + b_ref[...]


def residual_block(x_nlc, weight, bias, *, matmul_dtype=jnp.bfloat16):
    """x_nlc: (N, L, C) f32; weight: (C_out, C_in, K) PyTorch Conv1d; bias: (C_out,)."""
    N, L, C = x_nlc.shape
    c_out, c_in, K = weight.shape
    assert c_out == C and c_in == C, "ResidualBlock conv is C -> C"
    assert K % 2 == 1, "'same' padding math (pad=(K-1)//2) assumes odd filter width"
    pad = (K - 1) // 2
    halo = 8                      # sublane-aligned halo (>= pad)
    assert pad <= halo
    Lp = L + 2 * halo

    # One-time parameter folding outside the kernel: 0.3 residual scale and
    # im2col weight layout (C_out, C_in, K) -> (K, C_in, C_out) -> (K*C_in, C_out).
    w2 = (0.3 * jnp.transpose(weight, (2, 1, 0)).reshape(K * C, C)
          ).astype(matmul_dtype)
    b2 = (0.3 * bias).reshape(1, C).astype(jnp.float32)

    kernel = functools.partial(_resblock_kernel, kw=K, pad=pad, halo=halo,
                               matmul_dtype=matmul_dtype)

    return pl.pallas_call(
        kernel,
        out_shape=jax.ShapeDtypeStruct((N, L, C), jnp.float32),
        grid_spec=pltpu.PrefetchScalarGridSpec(
            num_scalar_prefetch=0,
            grid=(N,),
            in_specs=[
                pl.BlockSpec((1, L, C), lambda n: (n, 0, 0)),     # x (single copy)
                pl.BlockSpec((K * C, C), lambda n: (0, 0)),        # folded weight
                pl.BlockSpec((1, C), lambda n: (0, 0)),            # folded bias
            ],
            out_specs=pl.BlockSpec((1, L, C), lambda n: (n, 0, 0)),
            scratch_shapes=[pltpu.VMEM((Lp, C), jnp.float32)],
        ),
        compiler_params=pltpu.CompilerParams(
            dimension_semantics=("parallel",)),
    )(x_nlc, w2, b2)


def reference(x_nlc, weight, bias):
    """Plain-JAX f32 reference mirroring PyTorch: x + 0.3 * conv1d(relu(x))."""
    N, L, C = x_nlc.shape
    K = weight.shape[2]
    pad = (K - 1) // 2
    xr = jnp.maximum(x_nlc, 0.0)
    xp = jnp.pad(xr, ((0, 0), (pad, pad), (0, 0)))
    acc = jnp.zeros((N, L, C), jnp.float32)
    for k in range(K):
        acc = acc + jnp.einsum("nlc,oc->nlo", xp[:, k:k + L, :], weight[:, :, k])
    acc = acc + bias[None, None, :]
    return x_nlc + 0.3 * acc


if __name__ == "__main__":
    key = jax.random.PRNGKey(0)
    k_x, k_w, k_b = jax.random.split(key, 3)

    N, C, L, K = 2, 16, 16, 5   # small shapes consistent with Conv1d(C, C, 5)

    # PyTorch-style input is (N, C, L); kernel uses channel-last (N, L, C).
    x_ncl = jax.random.normal(k_x, (N, C, L), dtype=jnp.float32)
    x_nlc = jnp.transpose(x_ncl, (0, 2, 1))

    # Deterministic synthetic Conv1d params: weight (C_out, C_in, K), bias (C_out,).
    weight = 0.1 * jax.random.normal(k_w, (C, C, K), dtype=jnp.float32)
    bias = 0.1 * jax.random.normal(k_b, (C,), dtype=jnp.float32)

    ref = reference(x_nlc, weight, bias)

    # f32-operand path: tight structural check against the reference.
    out_f32 = jax.block_until_ready(
        residual_block(x_nlc, weight, bias, matmul_dtype=jnp.float32))
    assert jnp.allclose(out_f32, ref, atol=1e-5, rtol=1e-5), "f32 path mismatch"

    # Default bf16-operand path (v6e/v7x MXU guidance): bf16-level tolerance.
    out = jax.block_until_ready(residual_block(x_nlc, weight, bias))
    assert jnp.allclose(out, ref, atol=2e-2, rtol=2e-2), "bf16 path mismatch"

    print("KERNEL_OK")
</pallas_src>

<mosaic_0001>
module attributes {stable_mosaic.version = 11 : i64} {
  func.func @_resblock_kernel(%arg0: i32, %arg1: memref<1x16x16xf32, #tpu.memory_space<vmem>>, %arg2: memref<80x16xf32, #tpu.memory_space<vmem>>, %arg3: memref<1x16xf32, #tpu.memory_space<vmem>>, %arg4: memref<1x16x16xf32, #tpu.memory_space<vmem>>, %arg5: memref<32x16xf32, #tpu.memory_space<vmem>>) attributes {dimension_semantics = [#tpu.dimension_semantics<parallel>], iteration_bounds = array<i64: 2>, scalar_prefetch = 0 : i64, scratch_operands = 1 : i64, tpu.core_type = #tpu.core_type<tc>, window_params = [{transform_indices = @transform_0, window_bounds = array<i64: 1, 16, 16>}, {pipeline_mode = #tpu.pipeline_mode<synchronous>, transform_indices = @transform_1, window_bounds = array<i64: 80, 16>}, {pipeline_mode = #tpu.pipeline_mode<synchronous>, transform_indices = @transform_2, window_bounds = array<i64: 1, 16>}, {transform_indices = @transform_3, window_bounds = array<i64: 1, 16, 16>}]} {
    %c0 = arith.constant 0 : index
    %c0_0 = arith.constant 0 : index
    %c0_1 = arith.constant 0 : index
    %0 = vector.load %arg1[%c0, %c0_0, %c0_1] : memref<1x16x16xf32, #tpu.memory_space<vmem>>, vector<1x16x16xf32>
    %1 = vector.shape_cast %0 : vector<1x16x16xf32> to vector<16x16xf32>
    %cst = arith.constant 0.000000e+00 : f32
    %2 = vector.broadcast %cst : f32 to vector<32x16xf32>
    %c0_2 = arith.constant 0 : index
    %c0_3 = arith.constant 0 : index
    %3 = vector.load %arg5[%c0_2, %c0_3] : memref<32x16xf32, #tpu.memory_space<vmem>>, vector<32x16xf32>
    tpu.vector_store %arg5[%c0_2, %c0_3], %2 {strides = array<i32>} : memref<32x16xf32, #tpu.memory_space<vmem>>, vector<32x16xf32>,
    %cst_4 = arith.constant 0.000000e+00 : f32
    %4 = vector.broadcast %cst_4 : f32 to vector<16x16xf32>
    %5 = arith.maximumf %1, %4 : vector<16x16xf32>
    %c8 = arith.constant 8 : index
    %c0_5 = arith.constant 0 : index
    %6 = vector.load %arg5[%c8, %c0_5] : memref<32x16xf32, #tpu.memory_space<vmem>>, vector<16x16xf32>
    tpu.vector_store %arg5[%c8, %c0_5], %5 {strides = array<i32>} : memref<32x16xf32, #tpu.memory_space<vmem>>, vector<16x16xf32>,
    %c6 = arith.constant 6 : index
    %c0_6 = arith.constant 0 : index
    %7 = vector.load %arg5[%c6, %c0_6] : memref<32x16xf32, #tpu.memory_space<vmem>>, vector<16x16xf32>
    %c7 = arith.constant 7 : index
    %c0_7 = arith.constant 0 : index
    %8 = vector.load %arg5[%c7, %c0_7] : memref<32x16xf32, #tpu.memory_space<vmem>>, vector<16x16xf32>
    %c8_8 = arith.constant 8 : index
    %c0_9 = arith.constant 0 : index
    %9 = vector.load %arg5[%c8_8, %c0_9] : memref<32x16xf32, #tpu.memory_space<vmem>>, vector<16x16xf32>
    %c9 = arith.constant 9 : index
    %c0_10 = arith.constant 0 : index
    %10 = vector.load %arg5[%c9, %c0_10] : memref<32x16xf32, #tpu.memory_space<vmem>>, vector<16x16xf32>
    %c10 = arith.constant 10 : index
    %c0_11 = arith.constant 0 : index
    %11 = vector.load %arg5[%c10, %c0_11] : memref<32x16xf32, #tpu.memory_space<vmem>>, vector<16x16xf32>
    %12 = tpu.concatenate %7, %8, %9, %10, %11 in 1 : vector<16x16xf32>, vector<16x16xf32>, vector<16x16xf32>, vector<16x16xf32>, vector<16x16xf32> -> vector<16x80xf32>
    %c0_12 = arith.constant 0 : index
    %c0_13 = arith.constant 0 : index
    %13 = vector.load %arg2[%c0_12, %c0_13] : memref<80x16xf32, #tpu.memory_space<vmem>>, vector<80x16xf32>
    %cst_14 = arith.constant dense<0.000000e+00> : vector<16x16xf32>
    %14 = tpu.matmul %12, %13, %cst_14 {dimension_numbers = #tpu.dot_dimension_numbers<[1], [0], [0], [1], [0, 0, 1, 1], [], []>} : vector<16x80xf32>, vector<80x16xf32>, vector<16x16xf32> -> vector<16x16xf32>
    %15 = arith.addf %1, %14 : vector<16x16xf32>
    %c0_15 = arith.constant 0 : index
    %c0_16 = arith.constant 0 : index
    %16 = vector.load %arg3[%c0_15, %c0_16] : memref<1x16xf32, #tpu.memory_space<vmem>>, vector<1x16xf32>
    %17 = vector.broadcast %16 : vector<1x16xf32> to vector<16x16xf32>
    %18 = arith.addf %15, %17 : vector<16x16xf32>
    %c0_17 = arith.constant 0 : index
    %c0_18 = arith.constant 0 : index
    %c0_19 = arith.constant 0 : index
    %19 = vector.load %arg4[%c0_17, %c0_18, %c0_19] : memref<1x16x16xf32, #tpu.memory_space<vmem>>, vector<1x16x16xf32>
    %20 = vector.shape_cast %19 : vector<1x16x16xf32> to vector<16x16xf32>
    %21 = vector.shape_cast %18 : vector<16x16xf32> to vector<1x16x16xf32>
    tpu.vector_store %arg4[%c0_17, %c0_18, %c0_19], %21 {strides = array<i32>} : memref<1x16x16xf32, #tpu.memory_space<vmem>>, vector<1x16x16xf32>,
    return
  }
  func.func @transform_0(%arg0: i32) -> (i32, i32, i32) {
    %c0_i32 = arith.constant 0 : i32
    %c0_i32_0 = arith.constant 0 : i32
    %c0_i32_1 = arith.constant 0 : i32
    return %arg0, %c0_i32, %c0_i32_0 : i32, i32, i32
  }
  func.func @transform_1(%arg0: i32) -> (i32, i32) {
    %c0_i32 = arith.constant 0 : i32
    %c0_i32_0 = arith.constant 0 : i32
    %c0_i32_1 = arith.constant 0 : i32
    return %c0_i32, %c0_i32_0 : i32, i32
  }
  func.func @transform_2(%arg0: i32) -> (i32, i32) {
    %c0_i32 = arith.constant 0 : i32
    %c0_i32_0 = arith.constant 0 : i32
    %c0_i32_1 = arith.constant 0 : i32
    return %c0_i32, %c0_i32_0 : i32, i32
  }
  func.func @transform_3(%arg0: i32) -> (i32, i32, i32) {
    %c0_i32 = arith.constant 0 : i32
    %c0_i32_0 = arith.constant 0 : i32
    %c0_i32_1 = arith.constant 0 : i32
    return %arg0, %c0_i32, %c0_i32_0 : i32, i32, i32
  }
}

</mosaic_0001>

<llo_original>
// kernel: tpu_custom_call.1
$region0: #{tpu_custom_call.1}
  #allocation0 [shape = 'u32[]', space=smem, size = 0x4, offset = 0x4, fixed_abs, tag = 'smem constant byte address 0x4 - core index']
  #allocation1 [shape = 'u32[72,128]{1,0:T(1,128)}', space=vmem, size = 0x9000, scoped, tag = 'internal scratch']
  #allocation2 [shape = 'f32[32,16]{1,0:T(8,128)}', space=vmem, size = 0x4000, scoped, tag = 'scratch operand']
  %s0 = inlined_call_operand.vmem [shape: f32[2,16,16], index: 0, kind: input, shape index: {}]
  %s1 = inlined_call_operand.vmem [shape: f32[80,16], index: 1, kind: input, shape index: {}]
  %s2 = inlined_call_operand.vmem [shape: f32[1,16], index: 2, kind: input, shape index: {}]
  %s3 = inlined_call_operand.hbm [shape: f32[2,16,16], index: 3, kind: output, shape index: {}]
  %s4 = sld [smem:[#allocation0]]
  $region45: #{tpu_custom_call.1} parent=0
    _
  %s6 = ssub.s32 1, %s4
  %s7 = scalar_select 0, %s6, %s4
  $region1: #{tpu_custom_call.1} parent=0
    #allocation3 [shape = 'u8[16384]{0}', space=vmem, size = 0x4000, scoped, tag = 'output window, operand 0']
    #allocation4 [shape = 's32[2]{0}', space=sflag, size = 0x8, scoped, tag = 'scoped memory for tpu_custom_call.1']
    %8 = vsyncpa [#allocation4], 0
    %s9 = scalar_lea.sflag [#allocation4], 1
    %10 = vsyncpa %s9, 0
    loop: start=0, step=1, limit=4
    $region2: #{tpu_custom_call.1} parent=1 // loop_pre_header
      _
    $region3: #{tpu_custom_call.1} parent=1 // loop_header
      %s12 = sphi 0, %s16
      %p13 = scmp.ge.s32.totalorder %s12, 4
      %s22 = sphi 0, %s24
      %s25 = sphi 0, %s22
      %s26 = sphi 0, %s25
      %s42 = sphi 0, %s26
      %s46 = sphi 0, %s46
      %s48 = sphi 0, %s46
      %s49 = sphi 0, %s48
      %s63 = sphi 0, %s49
      %s67 = sphi 0, %s67
      %s69 = sphi 0, %s67
      %s70 = sphi 0, %s69
      %s84 = sphi 0, %s70
      %s90 = sphi 0, %s92
      %s93 = sphi 0, %s90
      %s94 = sphi 0, %s93
      %s110 = sphi 0, %s94
    $region4: #{tpu_custom_call.1} parent=1 // loop_header_branch
      %15 = sbr.rel (%p13) target = $region8
    $region5: #{tpu_custom_call.1} parent=1 // loop_body
      %s17 = ssub.s32 %s12, 1
      %s18 = ssub.s32 %s12, 2
      %s19 = sadd.s32 %s12, 1
      %s20 = ssub.s32 %s12, %s19
      %p21 = scmp.eq.s32.totalorder %s20, 0
      %s23 = sadd.s32 %s22, 1
      %s24 = scalar_select %p21, %s22, %s23
      %p27 = pneg %p21
      %p28 = scmp.eq.s32.totalorder %s12, 1
      %p29 = por %p27, %p28
      %p30 = scmp.ne.s32.totalorder %s22, %s25
      %p31 = scmp.eq.s32.totalorder %s12, 0
      %p32 = por %p30, %p31
      %p33 = scmp.ne.s32.totalorder %s22, %s25
      %p34 = scmp.eq.s32.totalorder %s17, 1
      %p35 = por %p33, %p34
      %p36 = scmp.ne.s32.totalorder %s25, %s26
      %p37 = scmp.eq.s32.totalorder %s17, 0
      %p38 = por %p36, %p37
      %p39 = scmp.ne.s32.totalorder %s25, %s26
      %p40 = scmp.eq.s32.totalorder %s18, 1
      %p41 = por %p39, %p40
      %p43 = scmp.ne.s32.totalorder %s26, %s42
      %p44 = scmp.eq.s32.totalorder %s18, 0
      %p45 = por %p43, %p44
      %s47 = sadd.s32 %s46, 1
      %p50 = scmp.eq.s32.totalorder %s12, 1
      %p51 = scmp.ne.s32.totalorder %s46, %s48
      %p52 = scmp.eq.s32.totalorder %s12, 0
      %p53 = por %p51, %p52
      %p54 = scmp.ne.s32.totalorder %s46, %s48
      %p55 = scmp.eq.s32.totalorder %s17, 1
      %p56 = por %p54, %p55
      %p57 = scmp.ne.s32.totalorder %s48, %s49
      %p58 = scmp.eq.s32.totalorder %s17, 0
      %p59 = por %p57, %p58
      %p60 = scmp.ne.s32.totalorder %s48, %s49
      %p61 = scmp.eq.s32.totalorder %s18, 1
      %p62 = por %p60, %p61
      %p64 = scmp.ne.s32.totalorder %s49, %s63
      %p65 = scmp.eq.s32.totalorder %s18, 0
      %p66 = por %p64, %p65
      %s68 = sadd.s32 %s67, 1
      %p71 = scmp.eq.s32.totalorder %s12, 1
      %p72 = scmp.ne.s32.totalorder %s67, %s69
      %p73 = scmp.eq.s32.totalorder %s12, 0
      %p74 = por %p72, %p73
      %p75 = scmp.ne.s32.totalorder %s67, %s69
      %p76 = scmp.eq.s32.totalorder %s17, 1
      %p77 = por %p75, %p76
      %p78 = scmp.ne.s32.totalorder %s69, %s70
      %p79 = scmp.eq.s32.totalorder %s17, 0
      %p80 = por %p78, %p79
      %p81 = scmp.ne.s32.totalorder %s69, %s70
      %p82 = scmp.eq.s32.totalorder %s18, 1
      %p83 = por %p81, %p82
      %p85 = scmp.ne.s32.totalorder %s70, %s84
      %p86 = scmp.eq.s32.totalorder %s18, 0
      %p87 = por %p85, %p86
      %s88 = ssub.s32 %s12, %s19
      %p89 = scmp.eq.s32.totalorder %s88, 0
      %s91 = sadd.s32 %s90, 1
      %s92 = scalar_select %p89, %s90, %s91
      %p95 = pneg %p89
      %p96 = scmp.eq.s32.totalorder %s12, 1
      %p97 = por %p95, %p96
      %p98 = scmp.ne.s32.totalorder %s90, %s93
      %p99 = scmp.eq.s32.totalorder %s12, 0
      %p100 = por %p98, %p99
      %p101 = scmp.ne.s32.totalorder %s90, %s93
      %p102 = scmp.eq.s32.totalorder %s17, 1
      %p103 = por %p101, %p102
      %p104 = scmp.ne.s32.totalorder %s93, %s94
      %p105 = scmp.eq.s32.totalorder %s17, 0
      %p106 = por %p104, %p105
      %p107 = scmp.ne.s32.totalorder %s93, %s94
      %p108 = scmp.eq.s32.totalorder %s18, 1
      %p109 = por %p107, %p108
      %p111 = scmp.ne.s32.totalorder %s94, %s110
      %p112 = scmp.eq.s32.totalorder %s18, 0
      %p113 = por %p111, %p112
      %p114 = scmp.le.s32.totalorder 1, %s12
      %p115 = scmp.lt.s32.totalorder %s12, 3
      %p116 = pnand %p114, %p115
      %p117 = pneg %p116
      // Predicated region
      $region9: #{tpu_custom_call.1} parent=5 // pred_check
        _
      $region10: #{tpu_custom_call.1} parent=5 // pred_check_branch
        %119 = sbr.rel (%p116) target = $region12
      $region11: #{tpu_custom_call.1} parent=5 // pred_region
        %s120 = ssub.s32 %s12, 1
        // Predicated region
        $region13: #{tpu_custom_call.1} parent=11 // pred_check
          %p121 = pneg %p59
        $region14: #{tpu_custom_call.1} parent=11 // pred_check_branch
          %123 = sbr.rel (%p121) target = $region16
        $region15: #{tpu_custom_call.1} parent=11 // pred_region
          _
        $region16: #{tpu_custom_call.1} parent=11 // pred_fallthru
          _
        // Predicated region
        $region17: #{tpu_custom_call.1} parent=11 // pred_check
          %p124 = pneg %p80
        $region18: #{tpu_custom_call.1} parent=11 // pred_check_branch
          %126 = sbr.rel (%p124) target = $region20
        $region19: #{tpu_custom_call.1} parent=11 // pred_region
          _
        $region20: #{tpu_custom_call.1} parent=11 // pred_fallthru
          _
      $region12: #{tpu_custom_call.1} parent=5 // pred_fallthru
        _
      %p127 = scmp.lt.s32.totalorder %s12, 2
      // Predicated region
      $region21: #{tpu_custom_call.1} parent=5 // pred_check
        %p128 = pneg %p127
      $region22: #{tpu_custom_call.1} parent=5 // pred_check_branch
        %130 = sbr.rel (%p128) target = $region24
      $region23: #{tpu_custom_call.1} parent=5 // pred_region
        // Predicated region
        $region25: #{tpu_custom_call.1} parent=23 // pred_check
          %p131 = pneg %p32
        $region26: #{tpu_custom_call.1} parent=23 // pred_check_branch
          %133 = sbr.rel (%p131) target = $region28
        $region27: #{tpu_custom_call.1} parent=23 // pred_region
          %p134 = scmp.lt.s32.totalorder %s12, 1
          %s135 = scalar_select %p134, %s12, 1
          %s136 = smul.addr %s135, 2
          %s137 = smul.addr %s136, 8
          %s138 = scalar_lea.vmem %s0, %s137
        $region28: #{tpu_custom_call.1} parent=23 // pred_fallthru
          _
      $region24: #{tpu_custom_call.1} parent=5 // pred_fallthru
        _
      %p139 = scmp.le.s32.totalorder 1, %s12
      %p140 = scmp.lt.s32.totalorder %s12, 3
      %p141 = pnand %p139, %p140
      %p142 = pneg %p141
      // Predicated region
      $region29: #{tpu_custom_call.1} parent=5 // pred_check
        _
      $region30: #{tpu_custom_call.1} parent=5 // pred_check_branch
        %144 = sbr.rel (%p141) target = $region32
      $region31: #{tpu_custom_call.1} parent=5 // pred_region
        %s145 = ssub.s32 %s12, 1
        %p146 = scmp.lt.s32.totalorder %s17, 1
        %s147 = scalar_select %p146, %s17, 1
        %s148 = smul.addr %s147, 2
        %s149 = smul.addr %s148, 8
        %s150 = scalar_lea.vmem %s0, %s149
        %p151 = pneg %p38
        %p152 = pneg %p35
        %p153 = pneg %p59
        %p154 = pneg %p56
        %p155 = pneg %p80
        %p156 = pneg %p77
        %p157 = pneg %p106
        %p158 = pneg %p103
        %s159 = sand.u32 %s93, 1
        %s160 = scalar_lea.sflag [#allocation4], %s159
        %s161 = sand.u32 %s93, 1
        %s162 = smul.addr %s161, 16
        %s163 = scalar_lea.vmem [#allocation3], %s162
        %p164 = scmp.lt.s32.totalorder %s17, 1
        %s165 = scalar_select %p164, %s17, 1
        %s166 = smul.addr %s165, 2
        %s167 = smul.addr %s166, 8
        %s168 = scalar_lea.vmem %s0, %s167
        %v169 = vld [vmem:[%s168] sm:$0xff]
        %v170 = vld [vmem:[%s168 + $0x8] sm:$0xff]
        %vm171 = vcmask 130048
        %172 = vst.msk [vmem:[#allocation2] sm:$0xff] %vm171, 0.0
        %173 = vst.msk [vmem:[#allocation2 + $0x8] sm:$0xff] %vm171, 0.0
        %174 = vst.msk [vmem:[#allocation2 + $0x10] sm:$0xff] %vm171, 0.0
        %175 = vst.msk [vmem:[#allocation2 + $0x18] sm:$0xff] %vm171, 0.0
        %v176 = vmax.f32 %v169, 0.0
        %v177 = vmax.f32 %v170, 0.0
        %178 = vst.msk [vmem:[#allocation2 + $0x8] sm:$0xff] %vm171, %v176
        %179 = vst.msk [vmem:[#allocation2 + $0x10] sm:$0xff] %vm171, %v177
        %v180 = vld [vmem:[#allocation2 + $0x6] sm:$0xff]
        %v181 = vld [vmem:[#allocation2 + $0xe] sm:$0xff]
        %v182 = vld [vmem:[#allocation2 + $0x7] sm:$0xff]
        %v183 = vld [vmem:[#allocation2 + $0xf] sm:$0xff]
        %v184 = vld [vmem:[#allocation2 + $0x8] sm:$0xff]
        %v185 = vld [vmem:[#allocation2 + $0x10] sm:$0xff]
        %v186 = vld [vmem:[#allocation2 + $0x9] sm:$0xff]
        %v187 = vld [vmem:[#allocation2 + $0x11] sm:$0xff]
        %v188 = vld [vmem:[#allocation2 + $0xa] sm:$0xff]
        %v189 = vld [vmem:[#allocation2 + $0x12] sm:$0xff]
        %192 = vrot.lane.b32.xlu0 %v182, 16
        %v193 = vpop.permute.xlu0 %192
        %194 = vrot.lane.b32.xlu0 %v183, 16
        %v195 = vpop.permute.xlu0 %194
        %200 = vrot.lane.b32.xlu0 %v184, 32
        %v201 = vpop.permute.xlu0 %200
        %202 = vrot.lane.b32.xlu0 %v185, 32
        %v203 = vpop.permute.xlu0 %202
        %208 = vrot.lane.b32.xlu0 %v186, 48
        %v209 = vpop.permute.xlu0 %208
        %210 = vrot.lane.b32.xlu0 %v187, 48
        %v211 = vpop.permute.xlu0 %210
        %216 = vrot.lane.b32.xlu0 %v188, 64
        %v217 = vpop.permute.xlu0 %216
        %218 = vrot.lane.b32.xlu0 %v189, 64
        %v219 = vpop.permute.xlu0 %218
        %v222 = vsel %vm171, %v180, %v193
        %v223 = vsel %vm171, %v181, %v195
        %vm224 = vcmask 261120
        %v225 = vsel %vm224, %v222, %v201
        %v226 = vsel %vm224, %v223, %v203
        %vm227 = vcmask 392192
        %v228 = vsel %vm227, %v225, %v209
        %v229 = vsel %vm227, %v226, %v211
        %vm230 = vcmask 523264
        %v231 = vsel %vm230, %v228, %v217
        %v232 = vsel %vm230, %v229, %v219
        %v233 = vld [vmem:[%s1] sm:$0xff]
        %v234 = vld [vmem:[%s1 + $0x8] sm:$0xff]
        %v235 = vld [vmem:[%s1 + $0x10] sm:$0xff]
        %v236 = vld [vmem:[%s1 + $0x18] sm:$0xff]
        %v237 = vld [vmem:[%s1 + $0x20] sm:$0xff]
        %v238 = vld [vmem:[%s1 + $0x28] sm:$0xff]
        %v239 = vld [vmem:[%s1 + $0x30] sm:$0xff]
        %v240 = vld [vmem:[%s1 + $0x38] sm:$0xff]
        %v241 = vld [vmem:[%s1 + $0x40] sm:$0xff]
        %v242 = vld [vmem:[%s1 + $0x48] sm:$0xff]
        %vm243 = vcmask 654336
        %v245 = vsel %vm243, %v231, 0
        %v248 = vsel %vm243, %v232, 0
        %250 = vmatpush.msra.mxu0 0.0
        %251 = vmatpush.msra.mxu0 0.0
        %252 = vmatpush.msra.mxu0 0.0
        %253 = vmatpush.msra.mxu0 0.0
        %254 = vmatpush.msra.mxu0 0.0
        %255 = vmatpush.msra.mxu0 0.0
        %256 = vmatpush.msra.mxu0 %v242
        %257 = vmatpush.msra.mxu0 %v241
        %258 = vmatpush.msra.mxu0 %v240
        %259 = vmatpush.msra.mxu0 %v239
        %260 = vmatpush.msra.mxu0 %v238
        %261 = vmatpush.msra.mxu0 %v237
        %262 = vmatpush.msra.mxu0 %v236
        %263 = vmatpush.msra.mxu0 %v235
        %264 = vmatpush.msra.mxu0 %v234
        %265 = vmatpush.msra.mxu0 %v233
        %266 = vmatmul.f32.gmra.mxu0 %v245
        %v267 = vpop.f32.mrf.mxu0
        %v268 = vadd.f32 0.0, %v267
        %269 = vmatmul.f32.gmra.mxu0 %v248
        %v270 = vpop.f32.mrf.mxu0
        %v271 = vadd.f32 0.0, %v270
        %272 = vdwg.mxu0
        %v273 = vadd.f32 %v169, %v268
        %v274 = vadd.f32 %v170, %v271
        %v275 = vld [vmem:[%s2] sm:$0x1]
        %v277 = vperm.slane %v275, 0
        %v279 = vadd.f32 %v273, %v277
        %v280 = vadd.f32 %v274, %v277
        %281 = vst.msk [vmem:[%s163] sm:$0xff] %vm171, %v279
        %282 = vst.msk [vmem:[%s163 + $0x8] sm:$0xff] %vm171, %v280
        %s283 = sand.u32 %s93, 1
        %s284 = scalar_lea.sflag [#allocation4], %s283
        %s285 = sand.u32 %s93, 1
        %s286 = smul.addr %s285, 16
        %s287 = scalar_lea.vmem [#allocation3], %s286
        // Predicated region
        $region33: #{tpu_custom_call.1} parent=31 // pred_check
          %p288 = pneg %p103
        $region34: #{tpu_custom_call.1} parent=31 // pred_check_branch
          %290 = sbr.rel (%p288) target = $region36
        $region35: #{tpu_custom_call.1} parent=31 // pred_region
          %292 = vsyncadd %s284, 0
          %s293 = smul.addr %s17, 2
          %s294 = smul.addr %s293, 8
          %s295 = scalar_lea.hbm %s3, %s294
          %s296 = sshll.u32 %s287, 4
          %s297 = int_to_ptr.vmem [resolvable:$true] %s296
          %s298 = sshll.u32 %s295, 4
          %s299 = int_to_ptr.hbm [resolvable:$true] %s298
          %304 = dma.vmem_to_hbm [thread:$0]  %s297, 256, %s299, %s284, 128, 128, 8
        $region36: #{tpu_custom_call.1} parent=31 // pred_fallthru
          _
      $region32: #{tpu_custom_call.1} parent=5 // pred_fallthru
        _
      %p305 = scmp.le.s32.totalorder 2, %s12
      // Predicated region
      $region37: #{tpu_custom_call.1} parent=5 // pred_check
        %p306 = pneg %p305
      $region38: #{tpu_custom_call.1} parent=5 // pred_check_branch
        %308 = sbr.rel (%p306) target = $region40
      $region39: #{tpu_custom_call.1} parent=5 // pred_region
        %s309 = ssub.s32 %s12, 2
        // Predicated region
        $region41: #{tpu_custom_call.1} parent=39 // pred_check
          %p310 = pneg %p109
        $region42: #{tpu_custom_call.1} parent=39 // pred_check_branch
          %312 = sbr.rel (%p310) target = $region44
        $region43: #{tpu_custom_call.1} parent=39 // pred_region
          %s313 = sand.u32 %s94, 1
          %s314 = scalar_lea.sflag [#allocation4], %s313
          %s315 = sand.u32 %s94, 1
          %s316 = smul.addr %s315, 16
          %s317 = scalar_lea.vmem [#allocation3], %s316
          %319 = dma.done %s314, 256
        $region44: #{tpu_custom_call.1} parent=39 // pred_fallthru
          _
      $region40: #{tpu_custom_call.1} parent=5 // pred_fallthru
        _
    $region6: #{tpu_custom_call.1} parent=1 // loop_footer
      %s16 = sadd.s32 1, %s12
    $region7: #{tpu_custom_call.1} parent=1 // loop_footer_branch
      %11 = sbr.rel target = $region3
    $region8: #{tpu_custom_call.1} parent=1 // loop_exit
      _
    %320 = vsyncpa [#allocation4], 1
    %s321 = scalar_lea.sflag [#allocation4], 1
    %322 = vsyncpa %s321, 1

</llo_original>
